<compile_context>
chip_gen: v7x
topology: tpu7x:2x2x1
jax: 0.10.0
libtpu: 0.0.40
codegen_flags: <defaults>
</compile_context>

<pallas_src>
import functools

import jax
import jax.numpy as jnp
from jax.experimental import pallas as pl
from jax.experimental.pallas import tpu as pltpu


_VMEM_LIMIT = 32 * 1024 * 1024          # safe scoped-VMEM limit on v5e / v6e / v7x
_MIN_ROWS_FOR_SPLIT = 64                # force >=2 grid steps above this many rows


def _round_up(x, m):
    return (x + m - 1) // m * m


def _cdiv(a, b):
    return -(-a // b)


@functools.lru_cache(maxsize=None)
def _max_tile_p():
    """Generation-aware max row tile: bigger tiles on 128-MiB-VMEM v5e/v6e, smaller on
    64-MiB v7x."""
    try:
        vmem = getattr(pltpu.get_tpu_info(), "vmem_capacity_bytes", 64 * 1024 * 1024)
    except Exception:  # pragma: no cover - conservative fallback
        vmem = 64 * 1024 * 1024
    return 2048 if vmem >= 100 * 1024 * 1024 else 1024


def _choose_tiling(P):
    """Divisor-style row tiling: at most ~one 8-row quantum of padding, and >=2 grid
    steps for non-tiny layers (pipelining + v7x 2-TensorCore sharding)."""
    P8 = _round_up(P, 8)
    n = max(1, _cdiv(P8, _max_tile_p()))
    if P8 >= _MIN_ROWS_FOR_SPLIT:
        n = max(n, 2)
    tile_p = _round_up(_cdiv(P8, n), 8)
    grid_n = _cdiv(P8, tile_p)
    return tile_p, grid_n, grid_n * tile_p


# ----------------------------- Pallas kernel -------------------------------- #

def _fused_matmul_kernel(*refs, mode):
    """One (tile_p, OCp) output tile: x = A @ W + b, then a fused epilogue.

    mode: "linear"  -> x
          "sigmoid" -> sigmoid(x)
          "gdn"     -> x * rsqrt(beta + x^2 @ gamma^T)   (gamma dot in gamma's dtype, bf16)
          "igdn"    -> x * sqrt (beta + x^2 @ gamma^T)
    """
    if mode in ("gdn", "igdn"):
        a_ref, w_ref, b_ref, g_ref, beta_ref, o_ref = refs
    else:
        a_ref, w_ref, b_ref, o_ref = refs

    x = jnp.dot(a_ref[...], w_ref[...], preferred_element_type=jnp.float32)
    x = x + b_ref[...]                                    # f32 epilogue from here on
    if mode == "sigmoid":
        x = jax.nn.sigmoid(x)
    elif mode in ("gdn", "igdn"):
        xx = (x * x).astype(g_ref.dtype)                  # bf16 gamma matmul on the MXU
        s = jnp.dot(xx, g_ref[...], preferred_element_type=jnp.float32) + beta_ref[...]
        x = x * (jnp.sqrt(s) if mode == "igdn" else jax.lax.rsqrt(s))
    o_ref[...] = x.astype(o_ref.dtype)


def fused_matmul_packed(a, layer, *, mode, n_cols, out_dtype):
    """(P, K) @ (K, OCp) + b with fused epilogue, row-tiled & pipelined over P.

    `layer` holds pre-packed operands: w (K, OCp) compute-dtype, b (1, OCp) f32, and for
    GDN/IGDN g = gamma^T (OCp, OCp) compute-dtype and bt (1, OCp) f32."""
    P, K = a.shape
    w = layer["w"]
    OCp = w.shape[1]
    compute_dtype = w.dtype

    tile_p, grid_n, Pp = _choose_tiling(P)
    if a.dtype != compute_dtype:
        a = a.astype(compute_dtype)
    if Pp != P:
        # NOTE: padded rows compute x = bias in the GDN branch; they are sliced off below.
        a = jnp.pad(a, ((0, Pp - P), (0, 0)))

    operands = [a, w, layer["b"]]
    in_specs = [
        pl.BlockSpec((tile_p, K), lambda i: (i, 0)),
        pl.BlockSpec((K, OCp), lambda i: (0, 0)),
        pl.BlockSpec((1, OCp), lambda i: (0, 0)),
    ]
    if mode in ("gdn", "igdn"):
        operands += [layer["g"], layer["bt"]]
        in_specs += [
            pl.BlockSpec((OCp, OCp), lambda i: (0, 0)),
            pl.BlockSpec((1, OCp), lambda i: (0, 0)),
        ]

    out = pl.pallas_call(
        functools.partial(_fused_matmul_kernel, mode=mode),
        out_shape=jax.ShapeDtypeStruct((Pp, OCp), out_dtype),
        grid=(grid_n,),
        in_specs=in_specs,
        out_specs=pl.BlockSpec((tile_p, OCp), lambda i: (i, 0)),
        compiler_params=pltpu.CompilerParams(
            dimension_semantics=("parallel",),      # shards row tiles over v7x's 2 TCs
            vmem_limit_bytes=_VMEM_LIMIT),
    )(*operands)
    return out[:P, :n_cols]


# --------------------------- weight pre-packing ------------------------------ #
# All transposes / pads / casts of parameters happen ONCE here, outside the forward.

def _pack_matmul(wm, b, gamma, beta, compute_dtype):
    """Pack a (K, OC) weight matrix + bias (+ GDN gamma/beta) into lane-dense operands."""
    OC = wm.shape[1]
    OCp = _round_up(OC, 128)                       # lane-dense output slab
    wm = wm.astype(compute_dtype)
    b = b.astype(jnp.float32)
    if OCp != OC:
        wm = jnp.pad(wm, ((0, 0), (0, OCp - OC)))
        b = jnp.pad(b, (0, OCp - OC))
    layer = {"w": wm, "b": b.reshape(1, OCp)}
    if gamma is not None:
        g = gamma.T.astype(compute_dtype)          # bf16 gamma: GDN dot runs bf16 on MXU
        bt = beta.astype(jnp.float32)
        if OCp != OC:
            g = jnp.pad(g, ((0, OCp - OC), (0, OCp - OC)))
            bt = jnp.pad(bt, (0, OCp - OC), constant_values=1.0)   # keep rsqrt finite
        layer["g"] = g
        layer["bt"] = bt.reshape(1, OCp)
    return layer


def _pack_conv(w, b, gamma, beta, compute_dtype):
    """PyTorch Conv2d weight (OC, IC, K, K) -> (K*K*IC, OCp) matmul operand."""
    OC, IC, K, _ = w.shape
    wm = jnp.transpose(w, (2, 3, 1, 0)).reshape(K * K * IC, OC)
    return _pack_matmul(wm, b, gamma, beta, compute_dtype)


def _pack_deconv(w, b, gamma, beta, compute_dtype):
    """PyTorch ConvTranspose2d weight (IC, OC, 5, 5) -> merged-parity (9*IC, 4*OCp).

    The 4 parity sub-kernels (sub-pixel decomposition of stride-2 upsampling) are
    zero-padded to a common 3x3 (bottom/right aligned) so ONE 3x3 / pad-1 im2col of the
    un-dilated input feeds all parities; GDN uses a block-diagonal gamma (exact, since
    GDN mixes only channels at the same output pixel)."""
    IC, OC = w.shape[0], w.shape[1]
    # equivalent stride-1 correlation kernel: flip taps, swap channel axes -> (OC, IC, 5, 5)
    w_conv = jnp.flip(w, axis=(2, 3)).transpose(1, 0, 2, 3)

    def sub(row_sl, col_sl):
        k = w_conv[:, :, row_sl, col_sl]
        kh, kw = k.shape[2], k.shape[3]
        k = jnp.pad(k, ((0, 0), (0, 0), (3 - kh, 0), (3 - kw, 0)))   # align bottom-right
        return jnp.transpose(k, (2, 3, 1, 0)).reshape(9 * IC, OC)

    ev, od = slice(0, None, 2), slice(1, None, 2)
    wm = jnp.concatenate([sub(ev, ev),      # ee: output (even row, even col)
                          sub(ev, od),      # eo
                          sub(od, ev),      # oe
                          sub(od, od)],     # oo
                         axis=1)            # (9*IC, 4*OC)
    bm = jnp.tile(b, 4)
    gm = None if gamma is None else jnp.kron(jnp.eye(4, dtype=gamma.dtype), gamma)
    btm = None if beta is None else jnp.tile(beta, 4)
    return _pack_matmul(wm, bm, gm, btm, compute_dtype)


# --------------------------- JAX glue (NHWC im2col) ------------------------- #

def _im2col_nhwc(x, kh, kw, stride, pad_h, pad_w):
    """kh*kw patches from an NHWC tensor -> (B*OH*OW, kh*kw*C), flatten order (kh, kw, c)."""
    B, H, W, C = x.shape
    xp = jnp.pad(x, ((0, 0), pad_h, pad_w, (0, 0)))
    Hp = H + pad_h[0] + pad_h[1]
    Wp = W + pad_w[0] + pad_w[1]
    OH = (Hp - kh) // stride + 1
    OW = (Wp - kw) // stride + 1
    cols = []
    for i in range(kh):
        for j in range(kw):
            cols.append(xp[:, i:i + stride * OH:stride, j:j + stride * OW:stride, :])
    patches = jnp.concatenate(cols, axis=-1)              # (B, OH, OW, kh*kw*C)
    return patches.reshape(B * OH * OW, kh * kw * C), OH, OW


def conv2d_packed(x, layer, *, stride, pad, ksize, mode, oc, out_dtype):
    """PyTorch-semantics Conv2d with fused bias/GDN. x: NHWC, layer: pre-packed weights."""
    B = x.shape[0]
    patches, OH, OW = _im2col_nhwc(x, ksize, ksize, stride, (pad, pad), (pad, pad))
    out = fused_matmul_packed(patches, layer, mode=mode, n_cols=oc, out_dtype=out_dtype)
    return out.reshape(B, OH, OW, oc)


def conv_transpose2d_packed(x, layer, *, mode, oc, out_dtype):
    """PyTorch-semantics ConvTranspose2d(5, stride=2, padding=2, output_padding=1) with
    fused bias/IGDN/sigmoid: ONE merged-parity matmul + a single depth-to-space."""
    B, H, W, _ = x.shape
    patches, _, _ = _im2col_nhwc(x, 3, 3, 1, (1, 1), (1, 1))        # OH=H, OW=W
    out = fused_matmul_packed(patches, layer, mode=mode, n_cols=4 * oc, out_dtype=out_dtype)
    out = out.reshape(B, H, W, 2, 2, oc)                            # (.., row_par, col_par, c)
    out = jnp.transpose(out, (0, 1, 3, 2, 4, 5)).reshape(B, 2 * H, 2 * W, oc)
    return out


# ------------------------------- parameters --------------------------------- #

def init_params(key, N=64, M=192):
    def w_init(k, shape, scale=0.05):
        return scale * jax.random.normal(k, shape, dtype=jnp.float32)

    ks = jax.random.split(key, 8)
    params = {}
    enc_shapes = [(N, 1, 5, 5), (N, N, 5, 5), (N, N, 5, 5), (M, N, 5, 5)]
    params["enc_conv"] = [(w_init(ks[i], s), jnp.zeros((s[0],), jnp.float32))
                          for i, s in enumerate(enc_shapes)]
    params["enc_gdn"] = [(jnp.ones((N,), jnp.float32), jnp.eye(N, dtype=jnp.float32))
                         for _ in range(3)]
    dec_shapes = [(M, N, 5, 5), (N, N, 5, 5), (N, N, 5, 5), (N, 1, 5, 5)]
    params["dec_conv"] = [(w_init(ks[4 + i], s), jnp.zeros((s[1],), jnp.float32))
                          for i, s in enumerate(dec_shapes)]
    params["dec_gdn"] = [(jnp.ones((N,), jnp.float32), jnp.eye(N, dtype=jnp.float32))
                         for _ in range(3)]
    return params


def prepack_params(params, compute_dtype=jnp.bfloat16):
    """Run once outside jit: all weight transposes / pads / casts happen here."""
    enc, dec = [], []
    for i, (w, b) in enumerate(params["enc_conv"]):
        if i < len(params["enc_conv"]) - 1:
            beta, gamma = params["enc_gdn"][i]
        else:
            beta = gamma = None
        enc.append(_pack_conv(w, b, gamma, beta, compute_dtype))
    for i, (w, b) in enumerate(params["dec_conv"]):
        if i < len(params["dec_conv"]) - 1:
            beta, gamma = params["dec_gdn"][i]
        else:
            beta = gamma = None
        dec.append(_pack_deconv(w, b, gamma, beta, compute_dtype))
    return {"enc": enc, "dec": dec}


# --------------------------------- forward ---------------------------------- #

def compression_vae_forward(packed, x_nchw, *, N=64, M=192, training=False, key=None,
                            act_dtype=jnp.bfloat16):
    # NOTE: like the reference module, GDN has no reparameterization / lower bound on
    # beta/gamma; params are assumed to keep beta + x^2 @ gamma^T > 0.
    x = jnp.transpose(x_nchw, (0, 2, 3, 1))               # NCHW -> NHWC once
    # encoder (bf16 inter-layer activations; f32 latent for exact quantization semantics)
    h = x
    for i in range(3):
        h = conv2d_packed(h, packed["enc"][i], stride=2, pad=2, ksize=5,
                          mode="gdn", oc=N, out_dtype=act_dtype)
    y = conv2d_packed(h, packed["enc"][3], stride=2, pad=2, ksize=5,
                      mode="linear", oc=M, out_dtype=jnp.float32)
    # quantization (train: uniform noise; eval: round-half-to-even == torch.round)
    if training:
        noise = jax.random.uniform(key, y.shape, dtype=y.dtype) - 0.5
        y_quant = y + noise
    else:
        y_quant = jnp.round(y)
    # decoder (merged-parity transposed convs; f32 only for the final sigmoid output)
    h = y_quant
    for i in range(3):
        h = conv_transpose2d_packed(h, packed["dec"][i], mode="igdn", oc=N,
                                    out_dtype=act_dtype)
    x_hat = conv_transpose2d_packed(h, packed["dec"][3], mode="sigmoid", oc=1,
                                    out_dtype=jnp.float32)
    return jnp.transpose(x_hat, (0, 3, 1, 2)), jnp.transpose(y_quant, (0, 3, 1, 2))


# ---------------------- correctness checks vs. XLA refs --------------------- #

def _ref_conv2d(x, w, b, stride, pad):
    w_hwio = jnp.transpose(w, (2, 3, 1, 0))
    out = jax.lax.conv_general_dilated(
        x, w_hwio, window_strides=(stride, stride), padding=((pad, pad), (pad, pad)),
        dimension_numbers=("NHWC", "HWIO", "NHWC"), precision=jax.lax.Precision.HIGHEST)
    return out + b.reshape(1, 1, 1, -1)


def _ref_conv_transpose2d(x, w, b, stride, pad, out_pad):
    K = w.shape[-1]
    w_conv = jnp.flip(w, axis=(2, 3)).transpose(1, 0, 2, 3)
    w_hwio = jnp.transpose(w_conv, (2, 3, 1, 0))
    out = jax.lax.conv_general_dilated(
        x, w_hwio, window_strides=(1, 1),
        padding=((K - 1 - pad, K - 1 - pad + out_pad),) * 2, lhs_dilation=(stride, stride),
        dimension_numbers=("NHWC", "HWIO", "NHWC"), precision=jax.lax.Precision.HIGHEST)
    return out + b.reshape(1, 1, 1, -1)


def _ref_gdn(x, beta, gamma, inverse):
    s = jnp.einsum("bhwj,ij->bhwi", x * x, gamma,
                   precision=jax.lax.Precision.HIGHEST) + beta.reshape(1, 1, 1, -1)
    return x * jnp.sqrt(s) if inverse else x / jnp.sqrt(s)


def _assert_close(got, want, name, tol):
    err = float(jnp.max(jnp.abs(got.astype(jnp.float32) - want)))
    assert err < tol, f"{name}: max abs err {err:.4g} (tol {tol})"


def _run_unit_checks(key):
    """Validate the Pallas lowering (f32 path tight tolerance, bf16 production path loose)."""
    k1, k2, k3, k4, k5 = jax.random.split(key, 5)
    B, H, W, IC, OC = 2, 6, 6, 8, 16
    x = jax.random.normal(k1, (B, H, W, IC), jnp.float32)
    bias = 0.2 * jax.random.normal(k2, (OC,), jnp.float32)
    beta = jnp.ones((OC,), jnp.float32)
    gamma = 0.05 * jnp.abs(jax.random.normal(k3, (OC, OC), jnp.float32))  # non-symmetric
    w_c = 0.07 * jax.random.normal(k4, (OC, IC, 5, 5), jnp.float32)
    w_t = 0.07 * jax.random.normal(k5, (IC, OC, 5, 5), jnp.float32)

    want_c = _ref_gdn(_ref_conv2d(x, w_c, bias, 2, 2), beta, gamma, inverse=False)
    want_t = _ref_gdn(_ref_conv_transpose2d(x, w_t, bias, 2, 2, 1), beta, gamma, inverse=True)

    for cdt, tol in ((jnp.float32, 2e-2), (jnp.bfloat16, 1e-1)):
        name = jnp.dtype(cdt).name
        lc = _pack_conv(w_c, bias, gamma, beta, cdt)
        got = conv2d_packed(x, lc, stride=2, pad=2, ksize=5, mode="gdn", oc=OC,
                            out_dtype=jnp.float32)
        _assert_close(got, want_c, f"conv2d+GDN[{name}]", tol)

        lt = _pack_deconv(w_t, bias, gamma, beta, cdt)
        got = conv_transpose2d_packed(x, lt, mode="igdn", oc=OC, out_dtype=jnp.float32)
        _assert_close(got, want_t, f"conv_transpose2d+IGDN[{name}]", tol)


# ----------------------------------- main ------------------------------------ #

if __name__ == "__main__":
    key = jax.random.PRNGKey(0)
    k_param, k_data, k_test = jax.random.split(key, 3)

    # structural correctness of the Pallas conv / merged-parity deconv / GDN lowering
    _run_unit_checks(k_test)

    N, M = 64, 192
    params = init_params(k_param, N=N, M=M)
    packed = prepack_params(params, compute_dtype=jnp.bfloat16)   # once, outside jit

    B, H, W = 2, 32, 32                      # 16x downsampling -> 2x2 latent
    x = jax.random.uniform(k_data, (B, 1, H, W), dtype=jnp.float32)   # NCHW, in [0,1)

    fwd = jax.jit(functools.partial(compression_vae_forward, N=N, M=M,
                                    training=False, act_dtype=jnp.bfloat16))
    x_hat, y_quant = fwd(packed, x)
    jax.block_until_ready((x_hat, y_quant))

    assert x_hat.shape == (B, 1, H, W), x_hat.shape
    assert y_quant.shape == (B, M, H // 16, W // 16), y_quant.shape
    assert bool(jnp.all(jnp.isfinite(x_hat)))
    assert bool(jnp.all((x_hat >= 0.0) & (x_hat <= 1.0)))   # sigmoid output range

    print("KERNEL_OK")
</pallas_src>

<mosaic_0001>
module attributes {stable_mosaic.version = 11 : i64} {
  func.func @_fused_matmul_kernel(%arg0: i32, %arg1: memref<24x200xf32, #tpu.memory_space<vmem>>, %arg2: memref<200x128xf32, #tpu.memory_space<vmem>>, %arg3: memref<1x128xf32, #tpu.memory_space<vmem>>, %arg4: memref<128x128xf32, #tpu.memory_space<vmem>>, %arg5: memref<1x128xf32, #tpu.memory_space<vmem>>, %arg6: memref<24x128xf32, #tpu.memory_space<vmem>>) attributes {dimension_semantics = [#tpu.dimension_semantics<parallel>], iteration_bounds = array<i64: 1>, scalar_prefetch = 0 : i64, scratch_operands = 0 : i64, tpu.core_type = #tpu.core_type<tc>, window_params = [{transform_indices = @transform_0, window_bounds = array<i64: 24, 200>}, {pipeline_mode = #tpu.pipeline_mode<synchronous>, transform_indices = @transform_1, window_bounds = array<i64: 200, 128>}, {pipeline_mode = #tpu.pipeline_mode<synchronous>, transform_indices = @transform_2, window_bounds = array<i64: 1, 128>}, {pipeline_mode = #tpu.pipeline_mode<synchronous>, transform_indices = @transform_3, window_bounds = array<i64: 128, 128>}, {pipeline_mode = #tpu.pipeline_mode<synchronous>, transform_indices = @transform_4, window_bounds = array<i64: 1, 128>}, {transform_indices = @transform_5, window_bounds = array<i64: 24, 128>}]} {
    %c0 = arith.constant 0 : index
    %c0_0 = arith.constant 0 : index
    %0 = vector.load %arg1[%c0, %c0_0] : memref<24x200xf32, #tpu.memory_space<vmem>>, vector<24x200xf32>
    %c0_1 = arith.constant 0 : index
    %c0_2 = arith.constant 0 : index
    %1 = vector.load %arg2[%c0_1, %c0_2] : memref<200x128xf32, #tpu.memory_space<vmem>>, vector<200x128xf32>
    %cst = arith.constant dense<0.000000e+00> : vector<24x128xf32>
    %2 = tpu.matmul %0, %1, %cst {dimension_numbers = #tpu.dot_dimension_numbers<[1], [0], [0], [1], [0, 0, 1, 1], [], []>} : vector<24x200xf32>, vector<200x128xf32>, vector<24x128xf32> -> vector<24x128xf32>
    %c0_3 = arith.constant 0 : index
    %c0_4 = arith.constant 0 : index
    %3 = vector.load %arg3[%c0_3, %c0_4] : memref<1x128xf32, #tpu.memory_space<vmem>>, vector<1x128xf32>
    %4 = vector.broadcast %3 : vector<1x128xf32> to vector<24x128xf32>
    %5 = arith.addf %2, %4 : vector<24x128xf32>
    %6 = arith.mulf %5, %5 : vector<24x128xf32>
    %c0_5 = arith.constant 0 : index
    %c0_6 = arith.constant 0 : index
    %7 = vector.load %arg4[%c0_5, %c0_6] : memref<128x128xf32, #tpu.memory_space<vmem>>, vector<128x128xf32>
    %cst_7 = arith.constant dense<0.000000e+00> : vector<24x128xf32>
    %8 = tpu.matmul %6, %7, %cst_7 {dimension_numbers = #tpu.dot_dimension_numbers<[1], [0], [0], [1], [0, 0, 1, 1], [], []>} : vector<24x128xf32>, vector<128x128xf32>, vector<24x128xf32> -> vector<24x128xf32>
    %c0_8 = arith.constant 0 : index
    %c0_9 = arith.constant 0 : index
    %9 = vector.load %arg5[%c0_8, %c0_9] : memref<1x128xf32, #tpu.memory_space<vmem>>, vector<1x128xf32>
    %10 = vector.broadcast %9 : vector<1x128xf32> to vector<24x128xf32>
    %11 = arith.addf %8, %10 : vector<24x128xf32>
    %12 = math.rsqrt %11 : vector<24x128xf32>
    %13 = arith.mulf %5, %12 : vector<24x128xf32>
    %c0_10 = arith.constant 0 : index
    %c0_11 = arith.constant 0 : index
    %14 = vector.load %arg6[%c0_10, %c0_11] : memref<24x128xf32, #tpu.memory_space<vmem>>, vector<24x128xf32>
    tpu.vector_store %arg6[%c0_10, %c0_11], %13 {strides = array<i32>} : memref<24x128xf32, #tpu.memory_space<vmem>>, vector<24x128xf32>,
    return
  }
  func.func @transform_0(%arg0: i32) -> (i32, i32) {
    %c0_i32 = arith.constant 0 : i32
    %c0_i32_0 = arith.constant 0 : i32
    return %arg0, %c0_i32 : i32, i32
  }
  func.func @transform_1(%arg0: i32) -> (i32, i32) {
    %c0_i32 = arith.constant 0 : i32
    %c0_i32_0 = arith.constant 0 : i32
    %c0_i32_1 = arith.constant 0 : i32
    return %c0_i32, %c0_i32_0 : i32, i32
  }
  func.func @transform_2(%arg0: i32) -> (i32, i32) {
    %c0_i32 = arith.constant 0 : i32
    %c0_i32_0 = arith.constant 0 : i32
    %c0_i32_1 = arith.constant 0 : i32
    return %c0_i32, %c0_i32_0 : i32, i32
  }
  func.func @transform_3(%arg0: i32) -> (i32, i32) {
    %c0_i32 = arith.constant 0 : i32
    %c0_i32_0 = arith.constant 0 : i32
    %c0_i32_1 = arith.constant 0 : i32
    return %c0_i32, %c0_i32_0 : i32, i32
  }
  func.func @transform_4(%arg0: i32) -> (i32, i32) {
    %c0_i32 = arith.constant 0 : i32
    %c0_i32_0 = arith.constant 0 : i32
    %c0_i32_1 = arith.constant 0 : i32
    return %c0_i32, %c0_i32_0 : i32, i32
  }
  func.func @transform_5(%arg0: i32) -> (i32, i32) {
    %c0_i32 = arith.constant 0 : i32
    %c0_i32_0 = arith.constant 0 : i32
    return %arg0, %c0_i32 : i32, i32
  }
}

</mosaic_0001>

<llo_original>
// kernel: tpu_custom_call.1
$region0: #{tpu_custom_call.1}
  #allocation0 [shape = 'u32[]', space=smem, size = 0x4, offset = 0x4, fixed_abs, tag = 'smem constant byte address 0x4 - core index']
  #allocation1 [shape = 'u32[144,128]{1,0:T(1,128)}', space=vmem, size = 0x12000, scoped, tag = 'internal scratch']
  %s0 = inlined_call_operand.hbm [shape: f32[24,200], index: 0, kind: input, shape index: {}]
  %s1 = inlined_call_operand.hbm [shape: f32[200,128], index: 1, kind: input, shape index: {}]
  %s2 = inlined_call_operand.vmem [shape: f32[1,128], index: 2, kind: input, shape index: {}]
  %s3 = inlined_call_operand.hbm [shape: f32[128,128], index: 3, kind: input, shape index: {}]
  %s4 = inlined_call_operand.vmem [shape: f32[1,128], index: 4, kind: input, shape index: {}]
  %s5 = inlined_call_operand.hbm [shape: f32[24,128], index: 5, kind: output, shape index: {}]
  %s6 = sld [smem:[#allocation0]]
  $region42: #{tpu_custom_call.1} parent=0
    _
  %s8 = ssub.s32 1, %s6
  %s9 = scalar_select 0, %s8, %s6
  $region1: #{tpu_custom_call.1} parent=0
    #allocation2 [shape = 'u8[24576]{0}', space=vmem, size = 0x6000, scoped, tag = 'input window, operand 0, single buffered']
    #allocation3 [shape = 's32[1]{0}', space=sflag, size = 0x4, scoped, tag = 'scoped memory for tpu_custom_call.1']
    #allocation4 [shape = 's32[1]{0}', space=sflag, size = 0x4, scoped, tag = 'scoped memory for tpu_custom_call.1']
    #allocation5 [shape = 'u8[102400]{0}', space=vmem, size = 0x19000, scoped, tag = 'input window, operand 1, single buffered']
    #allocation6 [shape = 's32[1]{0}', space=sflag, size = 0x4, scoped, tag = 'scoped memory for tpu_custom_call.1']
    #allocation7 [shape = 'u8[65536]{0}', space=vmem, size = 0x10000, scoped, tag = 'input window, operand 3, single buffered']
    #allocation8 [shape = 'u8[12288]{0}', space=vmem, size = 0x3000, scoped, tag = 'output window, operand 0, single buffered']
    %10 = vsyncpa [#allocation3], 0
    %11 = vsyncpa [#allocation6], 0
    %12 = vsyncpa [#allocation4], 0
    // Predicated region
    $region2: #{tpu_custom_call.1} parent=1 // pred_check
      _
    $region3: #{tpu_custom_call.1} parent=1 // pred_check_branch
      %14 = sbr.rel (0) target = $region5
    $region4: #{tpu_custom_call.1} parent=1 // pred_region
      %s16 = ssub.s32 768, 768
      %17 = vsyncadd [#allocation3], %s16
      %s18 = sshll.u32 [#allocation2], 4
      %s19 = int_to_ptr.vmem [resolvable:$true] %s18
      %24 = dma.hbm_to_vmem [thread:$0]  %s0, 768, %s19, [#allocation3], 256, 256, 16
    $region5: #{tpu_custom_call.1} parent=1 // pred_fallthru
      _
    // Predicated region
    $region6: #{tpu_custom_call.1} parent=1 // pred_check
      _
    $region7: #{tpu_custom_call.1} parent=1 // pred_check_branch
      %26 = sbr.rel (0) target = $region9
    $region8: #{tpu_custom_call.1} parent=1 // pred_region
      %s28 = ssub.s32 3200, 3200
      %29 = vsyncadd [#allocation6], %s28
      %s30 = sshll.u32 [#allocation5], 4
      %s31 = int_to_ptr.vmem [resolvable:$true] %s30
      %36 = dma.hbm_to_vmem [thread:$0]  %s1, 3200, %s31, [#allocation6], 128, 128, 8
    $region9: #{tpu_custom_call.1} parent=1 // pred_fallthru
      _
    // Predicated region
    $region10: #{tpu_custom_call.1} parent=1 // pred_check
      _
    $region11: #{tpu_custom_call.1} parent=1 // pred_check_branch
      %38 = sbr.rel (0) target = $region13
    $region12: #{tpu_custom_call.1} parent=1 // pred_region
      _
    $region13: #{tpu_custom_call.1} parent=1 // pred_fallthru
      _
    // Predicated region
    $region14: #{tpu_custom_call.1} parent=1 // pred_check
      _
    $region15: #{tpu_custom_call.1} parent=1 // pred_check_branch
      %40 = sbr.rel (0) target = $region17
    $region16: #{tpu_custom_call.1} parent=1 // pred_region
      %s42 = ssub.s32 2048, 2048
      %43 = vsyncadd [#allocation6], %s42
      %s44 = sshll.u32 [#allocation7], 4
      %s45 = int_to_ptr.vmem [resolvable:$true] %s44
      %50 = dma.hbm_to_vmem [thread:$0]  %s3, 2048, %s45, [#allocation6], 128, 128, 8
    $region17: #{tpu_custom_call.1} parent=1 // pred_fallthru
      _
    // Predicated region
    $region18: #{tpu_custom_call.1} parent=1 // pred_check
      _
    $region19: #{tpu_custom_call.1} parent=1 // pred_check_branch
      %52 = sbr.rel (0) target = $region21
    $region20: #{tpu_custom_call.1} parent=1 // pred_region
      _
    $region21: #{tpu_custom_call.1} parent=1 // pred_fallthru
      _
    // Predicated region
    $region22: #{tpu_custom_call.1} parent=1 // pred_check
      _
    $region23: #{tpu_custom_call.1} parent=1 // pred_check_branch
      %54 = sbr.rel (0) target = $region25
    $region24: #{tpu_custom_call.1} parent=1 // pred_region
      %55 = dma.done [#allocation3], 768
    $region25: #{tpu_custom_call.1} parent=1 // pred_fallthru
      _
    // Predicated region
    $region26: #{tpu_custom_call.1} parent=1 // pred_check
      _
    $region27: #{tpu_custom_call.1} parent=1 // pred_check_branch
      %57 = sbr.rel (0) target = $region29
    $region28: #{tpu_custom_call.1} parent=1 // pred_region
      %58 = dma.done [#allocation6], 3200
    $region29: #{tpu_custom_call.1} parent=1 // pred_fallthru
      _
    // Predicated region
    $region30: #{tpu_custom_call.1} parent=1 // pred_check
      _
    $region31: #{tpu_custom_call.1} parent=1 // pred_check_branch
      %60 = sbr.rel (0) target = $region33
    $region32: #{tpu_custom_call.1} parent=1 // pred_region
      %61 = dma.done [#allocation6], 2048
    $region33: #{tpu_custom_call.1} parent=1 // pred_fallthru
      _
    %v62 = vld [vmem:[#allocation2] sm:$0xff]
    %v63 = vld [vmem:[#allocation2 + $0x8] sm:$0xff]
    %v64 = vld [vmem:[#allocation2 + $0x10] sm:$0xff]
    %v65 = vld [vmem:[#allocation2 + $0x18] sm:$0xff]
    %v66 = vld [vmem:[#allocation2 + $0x20] sm:$0xff]
    %v67 = vld [vmem:[#allocation2 + $0x28] sm:$0xff]
    %v68 = vld [vmem:[#allocation5] sm:$0xff]
    %v69 = vld [vmem:[#allocation5 + $0x8] sm:$0xff]
    %v70 = vld [vmem:[#allocation5 + $0x10] sm:$0xff]
    %v71 = vld [vmem:[#allocation5 + $0x18] sm:$0xff]
    %v72 = vld [vmem:[#allocation5 + $0x20] sm:$0xff]
    %v73 = vld [vmem:[#allocation5 + $0x28] sm:$0xff]
    %v74 = vld [vmem:[#allocation5 + $0x30] sm:$0xff]
    %v75 = vld [vmem:[#allocation5 + $0x38] sm:$0xff]
    %v76 = vld [vmem:[#allocation5 + $0x40] sm:$0xff]
    %v77 = vld [vmem:[#allocation5 + $0x48] sm:$0xff]
    %v78 = vld [vmem:[#allocation5 + $0x50] sm:$0xff]
    %v79 = vld [vmem:[#allocation5 + $0x58] sm:$0xff]
    %v80 = vld [vmem:[#allocation5 + $0x60] sm:$0xff]
    %v81 = vld [vmem:[#allocation5 + $0x68] sm:$0xff]
    %v82 = vld [vmem:[#allocation5 + $0x70] sm:$0xff]
    %v83 = vld [vmem:[#allocation5 + $0x78] sm:$0xff]
    %v84 = vld [vmem:[#allocation5 + $0x80] sm:$0xff]
    %v85 = vld [vmem:[#allocation5 + $0x88] sm:$0xff]
    %v86 = vld [vmem:[#allocation5 + $0x90] sm:$0xff]
    %v87 = vld [vmem:[#allocation5 + $0x98] sm:$0xff]
    %v88 = vld [vmem:[#allocation5 + $0xa0] sm:$0xff]
    %v89 = vld [vmem:[#allocation5 + $0xa8] sm:$0xff]
    %v90 = vld [vmem:[#allocation5 + $0xb0] sm:$0xff]
    %v91 = vld [vmem:[#allocation5 + $0xb8] sm:$0xff]
    %v92 = vld [vmem:[#allocation5 + $0xc0] sm:$0xff]
    %v93 = vld [vmem:[%s2] sm:$0x1]
    %v95 = vlaneseq
    %v96 = vshrl.u32 %v95, 7
    %v97 = vsub.s32 0, %v96
    %v98 = vrot.slane %v93, %v97
    %vm100 = vcmask 588800
    %v102 = vsel %vm100, %v63, 0
    %v105 = vsel %vm100, %v65, 0
    %v108 = vsel %vm100, %v67, 0
    %110 = vmatprep.subr.mxu0 0.0
    %111 = vmatpush1.msra.mxu0 %v68
    %112 = vmatprep.subr.mxu0 0.0
    %113 = vmatpush1.msra.mxu0 %v69
    %114 = vmatprep.subr.mxu0 0.0
    %115 = vmatpush1.msra.mxu0 %v70
    %116 = vmatprep.subr.mxu0 0.0
    %117 = vmatpush1.msra.mxu0 %v71
    %118 = vmatprep.subr.mxu0 0.0
    %119 = vmatpush1.msra.mxu0 %v72
    %120 = vmatprep.subr.mxu0 0.0
    %121 = vmatpush1.msra.mxu0 %v73
    %122 = vmatprep.subr.mxu0 0.0
    %123 = vmatpush1.msra.mxu0 %v74
    %124 = vmatprep.subr.mxu0 0.0
    %125 = vmatpush1.msra.mxu0 %v75
    %126 = vmatprep.subr.mxu0 0.0
    %127 = vmatpush1.msra.mxu0 %v76
    %128 = vmatprep.subr.mxu0 0.0
    %129 = vmatpush1.msra.mxu0 %v77
    %130 = vmatprep.subr.mxu0 0.0
    %131 = vmatpush1.msra.mxu0 %v78
    %132 = vmatprep.subr.mxu0 0.0
    %133 = vmatpush1.msra.mxu0 %v79
    %134 = vmatprep.subr.mxu0 0.0
    %135 = vmatpush1.msra.mxu0 %v80
    %136 = vmatprep.subr.mxu0 0.0
    %137 = vmatpush1.msra.mxu0 %v81
    %138 = vmatprep.subr.mxu0 0.0
    %139 = vmatpush1.msra.mxu0 %v82
    %140 = vmatprep.subr.mxu0 0.0
    %141 = vmatpush1.msra.mxu0 %v83
    %142 = vmatprep.subr.mxu0 0.0
    %143 = vmatpush1.msra.mxu0 %v84
    %144 = vmatprep.subr.mxu0 0.0
    %145 = vmatpush1.msra.mxu0 %v85
    %146 = vmatprep.subr.mxu0 0.0
    %147 = vmatpush1.msra.mxu0 %v86
    %148 = vmatprep.subr.mxu0 0.0
    %149 = vmatpush1.msra.mxu0 %v87
    %150 = vmatprep.subr.mxu0 0.0
    %151 = vmatpush1.msra.mxu0 %v88
    %152 = vmatprep.subr.mxu0 0.0
    %153 = vmatpush1.msra.mxu0 %v89
    %154 = vmatprep.subr.mxu0 0.0
    %155 = vmatpush1.msra.mxu0 %v90
    %156 = vmatprep.subr.mxu0 0.0
    %157 = vmatpush1.msra.mxu0 %v91
    %158 = vmatprep.subr.mxu0 0.0
    %159 = vmatpush1.msra.mxu0 %v92
    %160 = vmatprep.subr.mxu0 0.0
    %161 = vmatpush1.msra.mxu0 0.0
    %162 = vmatprep.subr.mxu0 0.0
    %163 = vmatpush1.msra.mxu0 0.0
    %164 = vmatprep.subr.mxu0 0.0
    %165 = vmatpush1.msra.mxu0 0.0
    %166 = vmatprep.subr.mxu0 0.0
    %167 = vmatpush1.msra.mxu0 0.0
    %168 = vmatprep.subr.mxu0 0.0
    %169 = vmatpush1.msra.mxu0 0.0
    %170 = vmatprep.subr.mxu0 0.0
    %171 = vmatpush1.msra.mxu0 0.0
    %172 = vmatprep.subr.mxu0 0.0
    %173 = vmatpush1.msra.mxu0 0.0
    %174 = vmatprep.mubr.f32.mxu0 %v102
    %175 = vmatmul.mubr.f32.gmra.mrb[0].mxu0 %v62
    %v176 = vpop.f32.mrb[0].mxu0
    %v177 = vadd.f32 %v98, %v176
    %v178 = vpop.f32.mrb[0].mxu0
    %179 = vmatprep.mubr.f32.mxu0 %v105
    %180 = vmatmul.mubr.f32.gmra.mrb[0].mxu0 %v64
    %v181 = vpop.f32.mrb[0].mxu0
    %v182 = vadd.f32 %v98, %v181
    %v183 = vpop.f32.mrb[0].mxu0
    %184 = vmatprep.mubr.f32.mxu0 %v108
    %185 = vmatmul.mubr.f32.gmra.mrb[0].mxu0 %v66
    %v186 = vpop.f32.mrb[0].mxu0
    %v187 = vadd.f32 %v98, %v186
    %v188 = vpop.f32.mrb[0].mxu0
    %189 = vdwg.mxu0
    %v190 = vmul.f32 %v177, %v177
    %v191 = vmul.f32 %v182, %v182
    %v192 = vmul.f32 %v187, %v187
    %v193 = vld [vmem:[#allocation7] sm:$0xff]
    %v194 = vld [vmem:[#allocation7 + $0x8] sm:$0xff]
    %v195 = vld [vmem:[#allocation7 + $0x10] sm:$0xff]
    %v196 = vld [vmem:[#allocation7 + $0x18] sm:$0xff]
    %v197 = vld [vmem:[#allocation7 + $0x20] sm:$0xff]
    %v198 = vld [vmem:[#allocation7 + $0x28] sm:$0xff]
    %v199 = vld [vmem:[#allocation7 + $0x30] sm:$0xff]
    %v200 = vld [vmem:[#allocation7 + $0x38] sm:$0xff]
    %v201 = vld [vmem:[#allocation7 + $0x40] sm:$0xff]
    %v202 = vld [vmem:[#allocation7 + $0x48] sm:$0xff]
    %v203 = vld [vmem:[#allocation7 + $0x50] sm:$0xff]
    %v204 = vld [vmem:[#allocation7 + $0x58] sm:$0xff]
    %v205 = vld [vmem:[#allocation7 + $0x60] sm:$0xff]
    %v206 = vld [vmem:[#allocation7 + $0x68] sm:$0xff]
    %v207 = vld [vmem:[#allocation7 + $0x70] sm:$0xff]
    %v208 = vld [vmem:[#allocation7 + $0x78] sm:$0xff]
    %v209 = vld [vmem:[%s4] sm:$0x1]
    %v211 = vlaneseq
    %v212 = vshrl.u32 %v211, 7
    %v213 = vsub.s32 0, %v212
    %v214 = vrot.slane %v209, %v213
    %216 = vmatprep.subr.mxu0 0.0
    %217 = vmatpush1.msra.mxu0 %v193
    %218 = vmatprep.subr.mxu0 0.0
    %219 = vmatpush1.msra.mxu0 %v194
    %220 = vmatprep.subr.mxu0 0.0
    %221 = vmatpush1.msra.mxu0 %v195
    %222 = vmatprep.subr.mxu0 0.0
    %223 = vmatpush1.msra.mxu0 %v196
    %224 = vmatprep.subr.mxu0 0.0
    %225 = vmatpush1.msra.mxu0 %v197
    %226 = vmatprep.subr.mxu0 0.0
    %227 = vmatpush1.msra.mxu0 %v198
    %228 = vmatprep.subr.mxu0 0.0
    %229 = vmatpush1.msra.mxu0 %v199
    %230 = vmatprep.subr.mxu0 0.0
    %231 = vmatpush1.msra.mxu0 %v200
    %232 = vmatprep.subr.mxu0 0.0
    %233 = vmatpush1.msra.mxu0 %v201
    %234 = vmatprep.subr.mxu0 0.0
    %235 = vmatpush1.msra.mxu0 %v202
    %236 = vmatprep.subr.mxu0 0.0
    %237 = vmatpush1.msra.mxu0 %v203
    %238 = vmatprep.subr.mxu0 0.0
    %239 = vmatpush1.msra.mxu0 %v204
    %240 = vmatprep.subr.mxu0 0.0
    %241 = vmatpush1.msra.mxu0 %v205
    %242 = vmatprep.subr.mxu0 0.0
    %243 = vmatpush1.msra.mxu0 %v206
    %244 = vmatprep.subr.mxu0 0.0
    %245 = vmatpush1.msra.mxu0 %v207
    %246 = vmatprep.subr.mxu0 0.0
    %247 = vmatpush1.msra.mxu0 %v208
    %248 = vmatprep.subr.mxu0 0.0
    %249 = vmatpush1.msra.mxu0 0.0
    %250 = vmatprep.subr.mxu0 0.0
    %251 = vmatpush1.msra.mxu0 0.0
    %252 = vmatprep.subr.mxu0 0.0
    %253 = vmatpush1.msra.mxu0 0.0
    %254 = vmatprep.subr.mxu0 0.0
    %255 = vmatpush1.msra.mxu0 0.0
    %256 = vmatprep.subr.mxu0 0.0
    %257 = vmatpush1.msra.mxu0 0.0
    %258 = vmatprep.subr.mxu0 0.0
    %259 = vmatpush1.msra.mxu0 0.0
    %260 = vmatprep.subr.mxu0 0.0
    %261 = vmatpush1.msra.mxu0 0.0
    %262 = vmatprep.subr.mxu0 0.0
    %263 = vmatpush1.msra.mxu0 0.0
    %264 = vmatprep.subr.mxu0 0.0
    %265 = vmatpush1.msra.mxu0 0.0
    %266 = vmatprep.subr.mxu0 0.0
    %267 = vmatpush1.msra.mxu0 0.0
    %268 = vmatprep.subr.mxu0 0.0
    %269 = vmatpush1.msra.mxu0 0.0
    %270 = vmatprep.subr.mxu0 0.0
    %271 = vmatpush1.msra.mxu0 0.0
    %272 = vmatprep.subr.mxu0 0.0
    %273 = vmatpush1.msra.mxu0 0.0
    %274 = vmatprep.subr.mxu0 0.0
    %275 = vmatpush1.msra.mxu0 0.0
    %276 = vmatprep.subr.mxu0 0.0
    %277 = vmatpush1.msra.mxu0 0.0
    %278 = vmatprep.subr.mxu0 0.0
    %279 = vmatpush1.msra.mxu0 0.0
    %280 = vmatprep.mubr.f32.mxu0 0.0
    %281 = vmatmul.mubr.f32.gmra.mrb[0].mxu0 %v190
    %v282 = vpop.f32.mrb[0].mxu0
    %v283 = vadd.f32 %v214, %v282
    %v284 = vpop.f32.mrb[0].mxu0
    %285 = vmatprep.mubr.f32.mxu0 0.0
    %286 = vmatmul.mubr.f32.gmra.mrb[0].mxu0 %v191
    %v287 = vpop.f32.mrb[0].mxu0
    %v288 = vadd.f32 %v214, %v287
    %v289 = vpop.f32.mrb[0].mxu0
    %290 = vmatprep.mubr.f32.mxu0 0.0
    %291 = vmatmul.mubr.f32.gmra.mrb[0].mxu0 %v192
    %v292 = vpop.f32.mrb[0].mxu0
    %v293 = vadd.f32 %v214, %v292
    %v294 = vpop.f32.mrb[0].mxu0
    %295 = vdwg.mxu0
    %v296 = vrsqrt.pop %v283
    %v297 = vrsqrt.pop %v288
    %v298 = vrsqrt.pop %v293
    %v299 = vmul.f32 %v177, %v296
    %v300 = vmul.f32 %v182, %v297
    %v301 = vmul.f32 %v187, %v298
    %302 = vst [vmem:[#allocation8] sm:$0xff] %v299
    %303 = vst [vmem:[#allocation8 + $0x8] sm:$0xff] %v300
    %304 = vst [vmem:[#allocation8 + $0x10] sm:$0xff] %v301
    // Predicated region
    $region34: #{tpu_custom_call.1} parent=1 // pred_check
      _
    $region35: #{tpu_custom_call.1} parent=1 // pred_check_branch
      %306 = sbr.rel (0) target = $region37
    $region36: #{tpu_custom_call.1} parent=1 // pred_region
      %s308 = ssub.s32 384, 384
      %309 = vsyncadd [#allocation4], %s308
      %s310 = sshll.u32 [#allocation8], 4
      %s311 = int_to_ptr.vmem [resolvable:$true] %s310
      %316 = dma.vmem_to_hbm [thread:$0]  %s311, 384, %s5, [#allocation4], 128, 128, 8
    $region37: #{tpu_custom_call.1} parent=1 // pred_fallthru
      _
    // Predicated region
    $region38: #{tpu_custom_call.1} parent=1 // pred_check
      _
    $region39: #{tpu_custom_call.1} parent=1 // pred_check_branch
      %318 = sbr.rel (0) target = $region41
    $region40: #{tpu_custom_call.1} parent=1 // pred_region
      %319 = dma.done [#allocation4], 384
    $region41: #{tpu_custom_call.1} parent=1 // pred_fallthru
      _
    %320 = vsyncpa [#allocation3], 1
    %321 = vsyncpa [#allocation6], 1
    %322 = vsyncpa [#allocation4], 1

</llo_original>
